<compile_context>
chip_gen: v7x
topology: tpu7x:2x2x1
jax: 0.10.0
libtpu: 0.0.40
codegen_flags: <defaults>
</compile_context>

<pallas_src>
import functools

import jax
import jax.numpy as jnp
from jax.experimental import pallas as pl
from jax.experimental.pallas import tpu as pltpu


def _round_up(x: int, m: int) -> int:
    return (x + m - 1) // m * m


def dense_kernel(x_ref, w1_ref, b1_ref, w2_ref, b2_ref, o_ref, m_acc, s_acc,
                 *, tm: int, b_actual: int):
    phase = pl.program_id(0)   # 0: accumulate per-class max / sum-exp over batch, 1: write output
    bt = pl.program_id(1)      # batch-tile index

    # Initialize the cross-tile softmax accumulators once.
    @pl.when(jnp.logical_and(phase == 0, bt == 0))
    def _():
        m_acc[...] = jnp.full_like(m_acc, -jnp.inf)
        s_acc[...] = jnp.zeros_like(s_acc)

    # ---- fused MLP for this batch tile (recomputed in both sweeps; matmuls are tiny) ----
    # Matmul 1 on the MXU with bf16 operands, f32 accumulation.
    h = jnp.dot(x_ref[...], w1_ref[...], preferred_element_type=jnp.float32)
    h = jnp.maximum(h + b1_ref[...], 0.0)                 # f32 elementwise
    # Matmul 2 (128x128) in f32: negligible cost, better precision.
    logits = jnp.dot(h, w2_ref[...], preferred_element_type=jnp.float32) + b2_ref[...]

    # Mask for zero-padded batch rows: they must not enter the dim=0 softmax reduction.
    row_ids = jax.lax.broadcasted_iota(jnp.int32, logits.shape, 0) + bt * tm
    valid = row_ids < b_actual

    @pl.when(phase == 0)
    def _():
        tile_max = jnp.max(jnp.where(valid, logits, -jnp.inf), axis=0, keepdims=True)
        m_new = jnp.maximum(m_acc[...], tile_max)
        s_acc[...] = s_acc[...] * jnp.exp(m_acc[...] - m_new) + jnp.sum(
            jnp.where(valid, jnp.exp(logits - m_new), 0.0), axis=0, keepdims=True)
        m_acc[...] = m_new
        # Keep the output block defined in phase 0; phase 1 overwrites it with the real result.
        o_ref[...] = logits.astype(o_ref.dtype)

    @pl.when(phase == 1)
    def _():
        lse = m_acc[...] + jnp.log(s_acc[...])
        o_ref[...] = (logits - lse).astype(o_ref.dtype)


def dense_forward(x, w1, b1, w2, b2):
    """x: (B, ...) any trailing shape; w1: (in_dim, hidden); w2: (hidden, num_classes)."""
    B = x.shape[0]
    x_flat = x.reshape(B, -1)
    in_dim = x_flat.shape[1]
    hidden = w1.shape[1]
    num_classes = w2.shape[1]
    assert w1.shape == (in_dim, hidden)
    assert w2.shape == (hidden, num_classes)

    # Lane-dense padded sizes.
    K_pad = _round_up(in_dim, 128)
    H_pad = _round_up(hidden, 128)
    C_pad = _round_up(num_classes, 128)

    # Batch tiling (sublane multiple of 8, tiles up to 512 rows).
    B_pad8 = _round_up(B, 8)
    TM = min(512, B_pad8)
    B_pad = _round_up(B_pad8, TM)
    nbt = B_pad // TM

    # Zero-pad and cast.  x / w1 go to bf16 for the big MXU pass; biases and w2 stay f32.
    x_p = jnp.zeros((B_pad, K_pad), jnp.bfloat16).at[:B, :in_dim].set(
        x_flat.astype(jnp.bfloat16))
    w1_p = jnp.zeros((K_pad, H_pad), jnp.bfloat16).at[:in_dim, :hidden].set(
        w1.astype(jnp.bfloat16))
    b1_p = jnp.zeros((1, H_pad), jnp.float32).at[0, :hidden].set(b1.astype(jnp.float32))
    w2_p = jnp.zeros((H_pad, C_pad), jnp.float32).at[:hidden, :num_classes].set(
        w2.astype(jnp.float32))
    b2_p = jnp.zeros((1, C_pad), jnp.float32).at[0, :num_classes].set(
        b2.astype(jnp.float32))

    kernel = functools.partial(dense_kernel, tm=TM, b_actual=B)

    flops = 2 * 2 * B_pad * (K_pad * H_pad + H_pad * C_pad)          # both sweeps recompute
    bytes_accessed = (2 * x_p.size * 2 + w1_p.size * 2 + w2_p.size * 4
                      + (b1_p.size + b2_p.size) * 4 + 2 * B_pad * C_pad * 4)

    out_pad = pl.pallas_call(
        kernel,
        out_shape=jax.ShapeDtypeStruct((B_pad, C_pad), jnp.float32),
        grid_spec=pltpu.PrefetchScalarGridSpec(
            num_scalar_prefetch=0,
            grid=(2, nbt),
            in_specs=[
                pl.BlockSpec((TM, K_pad), lambda p, bt: (bt, 0)),     # x tile
                pl.BlockSpec((K_pad, H_pad), lambda p, bt: (0, 0)),   # w1 (resident)
                pl.BlockSpec((1, H_pad), lambda p, bt: (0, 0)),       # b1
                pl.BlockSpec((H_pad, C_pad), lambda p, bt: (0, 0)),   # w2
                pl.BlockSpec((1, C_pad), lambda p, bt: (0, 0)),       # b2
            ],
            out_specs=pl.BlockSpec((TM, C_pad), lambda p, bt: (bt, 0)),
            scratch_shapes=[
                pltpu.VMEM((1, C_pad), jnp.float32),   # running max   (per class)
                pltpu.VMEM((1, C_pad), jnp.float32),   # running sum-exp (per class)
            ],
        ),
        compiler_params=pltpu.CompilerParams(
            # Both axes are "arbitrary": the dim=0 softmax reduces across batch tiles,
            # so the batch axis cannot be megacore-parallel.
            dimension_semantics=("arbitrary", "arbitrary"),
            vmem_limit_bytes=32 * 1024 * 1024,
        ),
        cost_estimate=pl.CostEstimate(
            flops=flops,
            transcendentals=2 * B_pad * C_pad,
            bytes_accessed=bytes_accessed,
        ),
    )(x_p, w1_p, b1_p, w2_p, b2_p)

    # Slice away batch/class padding.
    return out_pad[:B, :num_classes]

    # TODO(synk): for very large in_dim, add a K grid axis with a VMEM accumulator instead
    # of loading the whole (in_dim, 128) weight per tile.


if __name__ == "__main__":
    # Small shapes consistent with the module: input (B, C, H, W) NCHW, flattened.
    B, C, H, W = 2, 4, 16, 16
    in_dim = C * H * W          # 1024
    hidden = 32
    num_classes = 10

    key = jax.random.PRNGKey(0)
    kx, kw1, kb1, kw2, kb2 = jax.random.split(key, 5)

    x = jax.random.normal(kx, (B, C, H, W), dtype=jnp.float32)

    # Parameter init mimicking nn.Linear's default uniform(-1/sqrt(fan_in), 1/sqrt(fan_in)).
    lim1 = 1.0 / jnp.sqrt(jnp.float32(in_dim))
    w1 = jax.random.uniform(kw1, (in_dim, hidden), jnp.float32, -lim1, lim1)
    b1 = jax.random.uniform(kb1, (hidden,), jnp.float32, -lim1, lim1)
    lim2 = 1.0 / jnp.sqrt(jnp.float32(hidden))
    w2 = jax.random.uniform(kw2, (hidden, num_classes), jnp.float32, -lim2, lim2)
    b2 = jax.random.uniform(kb2, (num_classes,), jnp.float32, -lim2, lim2)

    out = dense_forward(x, w1, b1, w2, b2)
    jax.block_until_ready(out)

    # f32 reference with the same semantics as the PyTorch forward (log_softmax over dim=0).
    x_flat = x.reshape(B, -1)
    ref = jax.nn.log_softmax(jnp.maximum(x_flat @ w1 + b1, 0.0) @ w2 + b2, axis=0)
    assert out.shape == (B, num_classes)
    assert jnp.allclose(out, ref, atol=3e-2, rtol=3e-2), "mismatch vs reference"

    print("KERNEL_OK")
</pallas_src>

<mosaic_0001>
module attributes {stable_mosaic.version = 11 : i64} {
  func.func @dense_kernel(%arg0: i32, %arg1: i32, %arg2: memref<8x1024xbf16, #tpu.memory_space<vmem>>, %arg3: memref<1024x128xbf16, #tpu.memory_space<vmem>>, %arg4: memref<1x128xf32, #tpu.memory_space<vmem>>, %arg5: memref<128x128xf32, #tpu.memory_space<vmem>>, %arg6: memref<1x128xf32, #tpu.memory_space<vmem>>, %arg7: memref<8x128xf32, #tpu.memory_space<vmem>>, %arg8: memref<1x128xf32, #tpu.memory_space<vmem>>, %arg9: memref<1x128xf32, #tpu.memory_space<vmem>>) attributes {dimension_semantics = [#tpu.dimension_semantics<arbitrary>, #tpu.dimension_semantics<arbitrary>], iteration_bounds = array<i64: 2, 1>, scalar_prefetch = 0 : i64, scratch_operands = 2 : i64, tpu.core_type = #tpu.core_type<tc>, window_params = [{transform_indices = @transform_0, window_bounds = array<i64: 8, 1024>}, {pipeline_mode = #tpu.pipeline_mode<synchronous>, transform_indices = @transform_1, window_bounds = array<i64: 1024, 128>}, {pipeline_mode = #tpu.pipeline_mode<synchronous>, transform_indices = @transform_2, window_bounds = array<i64: 1, 128>}, {pipeline_mode = #tpu.pipeline_mode<synchronous>, transform_indices = @transform_3, window_bounds = array<i64: 128, 128>}, {pipeline_mode = #tpu.pipeline_mode<synchronous>, transform_indices = @transform_4, window_bounds = array<i64: 1, 128>}, {transform_indices = @transform_5, window_bounds = array<i64: 8, 128>}]} {
    %c0_i32 = arith.constant 0 : i32
    %0 = arith.cmpi eq, %arg0, %c0_i32 : i32
    %c0_i32_0 = arith.constant 0 : i32
    %1 = arith.cmpi eq, %arg1, %c0_i32_0 : i32
    %2 = arith.andi %0, %1 : i1
    %3 = arith.extui %2 : i1 to i32
    %c0_i32_1 = arith.constant 0 : i32
    %4 = arith.cmpi ne, %3, %c0_i32_1 : i32
    scf.if %4 {
      %cst_16 = arith.constant 0xFF800000 : f32
      %30 = vector.broadcast %cst_16 : f32 to vector<1x128xf32>
      %c0_17 = arith.constant 0 : index
      %c0_18 = arith.constant 0 : index
      %31 = vector.load %arg8[%c0_17, %c0_18] : memref<1x128xf32, #tpu.memory_space<vmem>>, vector<1x128xf32>
      tpu.vector_store %arg8[%c0_17, %c0_18], %30 {strides = array<i32>} : memref<1x128xf32, #tpu.memory_space<vmem>>, vector<1x128xf32>,
      %cst_19 = arith.constant 0.000000e+00 : f32
      %32 = vector.broadcast %cst_19 : f32 to vector<1x128xf32>
      %c0_20 = arith.constant 0 : index
      %c0_21 = arith.constant 0 : index
      %33 = vector.load %arg9[%c0_20, %c0_21] : memref<1x128xf32, #tpu.memory_space<vmem>>, vector<1x128xf32>
      tpu.vector_store %arg9[%c0_20, %c0_21], %32 {strides = array<i32>} : memref<1x128xf32, #tpu.memory_space<vmem>>, vector<1x128xf32>,
    } else {
    }
    %c0 = arith.constant 0 : index
    %c0_2 = arith.constant 0 : index
    %5 = vector.load %arg2[%c0, %c0_2] : memref<8x1024xbf16, #tpu.memory_space<vmem>>, vector<8x1024xbf16>
    %c0_3 = arith.constant 0 : index
    %c0_4 = arith.constant 0 : index
    %6 = vector.load %arg3[%c0_3, %c0_4] : memref<1024x128xbf16, #tpu.memory_space<vmem>>, vector<1024x128xbf16>
    %cst = arith.constant dense<0.000000e+00> : vector<8x128xf32>
    %7 = tpu.matmul %5, %6, %cst {dimension_numbers = #tpu.dot_dimension_numbers<[1], [0], [0], [1], [0, 0, 1, 1], [], []>} : vector<8x1024xbf16>, vector<1024x128xbf16>, vector<8x128xf32> -> vector<8x128xf32>
    %c0_5 = arith.constant 0 : index
    %c0_6 = arith.constant 0 : index
    %8 = vector.load %arg4[%c0_5, %c0_6] : memref<1x128xf32, #tpu.memory_space<vmem>>, vector<1x128xf32>
    %9 = vector.broadcast %8 : vector<1x128xf32> to vector<8x128xf32>
    %10 = arith.addf %7, %9 : vector<8x128xf32>
    %cst_7 = arith.constant 0.000000e+00 : f32
    %11 = vector.broadcast %cst_7 : f32 to vector<8x128xf32>
    %12 = arith.maximumf %10, %11 : vector<8x128xf32>
    %c0_8 = arith.constant 0 : index
    %c0_9 = arith.constant 0 : index
    %13 = vector.load %arg5[%c0_8, %c0_9] : memref<128x128xf32, #tpu.memory_space<vmem>>, vector<128x128xf32>
    %cst_10 = arith.constant dense<0.000000e+00> : vector<8x128xf32>
    %14 = tpu.matmul %12, %13, %cst_10 {dimension_numbers = #tpu.dot_dimension_numbers<[1], [0], [0], [1], [0, 0, 1, 1], [], []>} : vector<8x128xf32>, vector<128x128xf32>, vector<8x128xf32> -> vector<8x128xf32>
    %c0_11 = arith.constant 0 : index
    %c0_12 = arith.constant 0 : index
    %15 = vector.load %arg6[%c0_11, %c0_12] : memref<1x128xf32, #tpu.memory_space<vmem>>, vector<1x128xf32>
    %16 = vector.broadcast %15 : vector<1x128xf32> to vector<8x128xf32>
    %17 = arith.addf %14, %16 : vector<8x128xf32>
    %18 = tpu.iota {dimensions = array<i32: 0>} : vector<8x128xi32>
    %c8_i32 = arith.constant 8 : i32
    %19 = arith.muli %arg1, %c8_i32 : i32
    %20 = vector.broadcast %19 : i32 to vector<8x128xi32>
    %21 = arith.addi %18, %20 : vector<8x128xi32>
    %c2_i32 = arith.constant 2 : i32
    %22 = vector.broadcast %c2_i32 : i32 to vector<8x128xi32>
    %23 = arith.cmpi slt, %21, %22 : vector<8x128xi32>
    %c0_i32_13 = arith.constant 0 : i32
    %24 = arith.cmpi eq, %arg0, %c0_i32_13 : i32
    %25 = arith.extui %24 : i1 to i32
    %c0_i32_14 = arith.constant 0 : i32
    %26 = arith.cmpi ne, %25, %c0_i32_14 : i32
    scf.if %26 {
      %cst_16 = arith.constant 0xFF800000 : f32
      %30 = vector.broadcast %cst_16 : f32 to vector<8x128xf32>
      %31 = arith.select %23, %17, %30 : vector<8x128xi1>, vector<8x128xf32>
      %cst_17 = arith.constant dense<0xFF800000> : vector<128xf32>
      %32 = vector.multi_reduction <maximumf>, %31, %cst_17 [0] : vector<8x128xf32> to vector<128xf32>
      %33 = vector.shape_cast %32 : vector<128xf32> to vector<1x128xf32>
      %c0_18 = arith.constant 0 : index
      %c0_19 = arith.constant 0 : index
      %34 = vector.load %arg8[%c0_18, %c0_19] : memref<1x128xf32, #tpu.memory_space<vmem>>, vector<1x128xf32>
      %35 = arith.maximumf %34, %33 : vector<1x128xf32>
      %c0_20 = arith.constant 0 : index
      %c0_21 = arith.constant 0 : index
      %36 = vector.load %arg9[%c0_20, %c0_21] : memref<1x128xf32, #tpu.memory_space<vmem>>, vector<1x128xf32>
      %c0_22 = arith.constant 0 : index
      %c0_23 = arith.constant 0 : index
      %37 = vector.load %arg8[%c0_22, %c0_23] : memref<1x128xf32, #tpu.memory_space<vmem>>, vector<1x128xf32>
      %38 = arith.subf %37, %35 : vector<1x128xf32>
      %39 = math.exp %38 : vector<1x128xf32>
      %40 = arith.mulf %36, %39 : vector<1x128xf32>
      %41 = vector.broadcast %35 : vector<1x128xf32> to vector<8x128xf32>
      %42 = arith.subf %17, %41 : vector<8x128xf32>
      %43 = math.exp %42 : vector<8x128xf32>
      %cst_24 = arith.constant 0.000000e+00 : f32
      %44 = vector.broadcast %cst_24 : f32 to vector<8x128xf32>
      %45 = arith.select %23, %43, %44 : vector<8x128xi1>, vector<8x128xf32>
      %cst_25 = arith.constant dense<0.000000e+00> : vector<128xf32>
      %46 = vector.multi_reduction <add>, %45, %cst_25 [0] : vector<8x128xf32> to vector<128xf32>
      %47 = vector.shape_cast %46 : vector<128xf32> to vector<1x128xf32>
      %48 = arith.addf %40, %47 : vector<1x128xf32>
      %c0_26 = arith.constant 0 : index
      %c0_27 = arith.constant 0 : index
      %49 = vector.load %arg9[%c0_26, %c0_27] : memref<1x128xf32, #tpu.memory_space<vmem>>, vector<1x128xf32>
      tpu.vector_store %arg9[%c0_26, %c0_27], %48 {strides = array<i32>} : memref<1x128xf32, #tpu.memory_space<vmem>>, vector<1x128xf32>,
      %c0_28 = arith.constant 0 : index
      %c0_29 = arith.constant 0 : index
      %50 = vector.load %arg8[%c0_28, %c0_29] : memref<1x128xf32, #tpu.memory_space<vmem>>, vector<1x128xf32>
      tpu.vector_store %arg8[%c0_28, %c0_29], %35 {strides = array<i32>} : memref<1x128xf32, #tpu.memory_space<vmem>>, vector<1x128xf32>,
      %c0_30 = arith.constant 0 : index
      %c0_31 = arith.constant 0 : index
      %51 = vector.load %arg7[%c0_30, %c0_31] : memref<8x128xf32, #tpu.memory_space<vmem>>, vector<8x128xf32>
      tpu.vector_store %arg7[%c0_30, %c0_31], %17 {strides = array<i32>} : memref<8x128xf32, #tpu.memory_space<vmem>>, vector<8x128xf32>,
    } else {
    }
    %c1_i32 = arith.constant 1 : i32
    %27 = arith.cmpi eq, %arg0, %c1_i32 : i32
    %28 = arith.extui %27 : i1 to i32
    %c0_i32_15 = arith.constant 0 : i32
    %29 = arith.cmpi ne, %28, %c0_i32_15 : i32
    scf.if %29 {
      %c0_16 = arith.constant 0 : index
      %c0_17 = arith.constant 0 : index
      %30 = vector.load %arg8[%c0_16, %c0_17] : memref<1x128xf32, #tpu.memory_space<vmem>>, vector<1x128xf32>
      %c0_18 = arith.constant 0 : index
      %c0_19 = arith.constant 0 : index
      %31 = vector.load %arg9[%c0_18, %c0_19] : memref<1x128xf32, #tpu.memory_space<vmem>>, vector<1x128xf32>
      %32 = math.log %31 : vector<1x128xf32>
      %33 = arith.addf %30, %32 : vector<1x128xf32>
      %34 = vector.broadcast %33 : vector<1x128xf32> to vector<8x128xf32>
      %35 = arith.subf %17, %34 : vector<8x128xf32>
      %c0_20 = arith.constant 0 : index
      %c0_21 = arith.constant 0 : index
      %36 = vector.load %arg7[%c0_20, %c0_21] : memref<8x128xf32, #tpu.memory_space<vmem>>, vector<8x128xf32>
      tpu.vector_store %arg7[%c0_20, %c0_21], %35 {strides = array<i32>} : memref<8x128xf32, #tpu.memory_space<vmem>>, vector<8x128xf32>,
    } else {
    }
    return
  }
  func.func @transform_0(%arg0: i32, %arg1: i32) -> (i32, i32) {
    %c0_i32 = arith.constant 0 : i32
    %c0_i32_0 = arith.constant 0 : i32
    return %arg1, %c0_i32 : i32, i32
  }
  func.func @transform_1(%arg0: i32, %arg1: i32) -> (i32, i32) {
    %c0_i32 = arith.constant 0 : i32
    %c0_i32_0 = arith.constant 0 : i32
    %c0_i32_1 = arith.constant 0 : i32
    return %c0_i32, %c0_i32_0 : i32, i32
  }
  func.func @transform_2(%arg0: i32, %arg1: i32) -> (i32, i32) {
    %c0_i32 = arith.constant 0 : i32
    %c0_i32_0 = arith.constant 0 : i32
    %c0_i32_1 = arith.constant 0 : i32
    return %c0_i32, %c0_i32_0 : i32, i32
  }
  func.func @transform_3(%arg0: i32, %arg1: i32) -> (i32, i32) {
    %c0_i32 = arith.constant 0 : i32
    %c0_i32_0 = arith.constant 0 : i32
    %c0_i32_1 = arith.constant 0 : i32
    return %c0_i32, %c0_i32_0 : i32, i32
  }
  func.func @transform_4(%arg0: i32, %arg1: i32) -> (i32, i32) {
    %c0_i32 = arith.constant 0 : i32
    %c0_i32_0 = arith.constant 0 : i32
    %c0_i32_1 = arith.constant 0 : i32
    return %c0_i32, %c0_i32_0 : i32, i32
  }
  func.func @transform_5(%arg0: i32, %arg1: i32) -> (i32, i32) {
    %c0_i32 = arith.constant 0 : i32
    %c0_i32_0 = arith.constant 0 : i32
    return %arg1, %c0_i32 : i32, i32
  }
}

</mosaic_0001>

<llo_original>
// kernel: tpu_custom_call.1
$region0: #{tpu_custom_call.1}
  #allocation0 [shape = 'u32[]', space=smem, size = 0x4, offset = 0x4, fixed_abs, tag = 'smem constant byte address 0x4 - core index']
  #allocation1 [shape = 'u32[144,128]{1,0:T(1,128)}', space=vmem, size = 0x12000, scoped, tag = 'internal scratch']
  #allocation2 [shape = 'f32[1,128]{1,0:T(1,128)}', space=vmem, size = 0x200, scoped, tag = 'scratch operand']
  #allocation3 [shape = 'f32[1,128]{1,0:T(1,128)}', space=vmem, size = 0x200, scoped, tag = 'scratch operand']
  %s0 = inlined_call_operand.hbm [shape: bf16[8,1024], index: 0, kind: input, shape index: {}]
  %s1 = inlined_call_operand.hbm [shape: bf16[1024,128], index: 1, kind: input, shape index: {}]
  %s2 = inlined_call_operand.vmem [shape: f32[1,128], index: 2, kind: input, shape index: {}]
  %s3 = inlined_call_operand.hbm [shape: f32[128,128], index: 3, kind: input, shape index: {}]
  %s4 = inlined_call_operand.vmem [shape: f32[1,128], index: 4, kind: input, shape index: {}]
  %s5 = inlined_call_operand.hbm [shape: f32[8,128], index: 5, kind: output, shape index: {}]
  %s6 = sld [smem:[#allocation0]]
  $region77: #{tpu_custom_call.1} parent=0
    _
  %s8 = ssub.s32 1, %s6
  %s9 = scalar_select 0, %s8, %s6
  $region1: #{tpu_custom_call.1} parent=0
    #allocation4 [shape = 'u8[16384]{0}', space=vmem, size = 0x4000, scoped, tag = 'input window, operand 0, single buffered']
    #allocation5 [shape = 's32[2]{0}', space=sflag, size = 0x8, scoped, tag = 'scoped memory for tpu_custom_call.1']
    #allocation6 [shape = 's32[2]{0}', space=sflag, size = 0x8, scoped, tag = 'scoped memory for tpu_custom_call.1']
    #allocation7 [shape = 'u8[262144]{0}', space=vmem, size = 0x40000, scoped, tag = 'input window, operand 1, single buffered']
    #allocation8 [shape = 's32[1]{0}', space=sflag, size = 0x4, scoped, tag = 'scoped memory for tpu_custom_call.1']
    #allocation9 [shape = 'u8[65536]{0}', space=vmem, size = 0x10000, scoped, tag = 'input window, operand 3, single buffered']
    #allocation10 [shape = 'u8[4096]{0}', space=vmem, size = 0x1000, scoped, tag = 'output window, operand 0, single buffered']
    %10 = vsyncpa [#allocation5], 0
    %11 = vsyncpa [#allocation8], 0
    %12 = vsyncpa [#allocation6], 0
    loop: start=0, step=1, limit=4
    $region2: #{tpu_custom_call.1} parent=1 // loop_pre_header
      _
    $region3: #{tpu_custom_call.1} parent=1 // loop_header
      %s14 = sphi 0, %s18
      %p15 = scmp.ge.s32.totalorder %s14, 4
      %s21 = sphi 0, %s33
      %s22 = sphi 0, %s29
      %s23 = sphi 0, %s21
      %s24 = sphi 0, %s22
      %s25 = sphi 0, %s23
      %s26 = sphi 0, %s24
      %s36 = sphi 0, %s38
      %s39 = sphi 0, %s36
      %s40 = sphi 0, %s39
      %s56 = sphi 0, %s40
      %s60 = sphi 0, %s60
      %s62 = sphi 0, %s60
      %s63 = sphi 0, %s62
      %s77 = sphi 0, %s63
      %s81 = sphi 0, %s81
      %s83 = sphi 0, %s81
      %s84 = sphi 0, %s83
      %s98 = sphi 0, %s84
      %s102 = sphi 0, %s102
      %s104 = sphi 0, %s102
      %s105 = sphi 0, %s104
      %s119 = sphi 0, %s105
      %s123 = sphi 0, %s123
      %s125 = sphi 0, %s123
      %s126 = sphi 0, %s125
      %s140 = sphi 0, %s126
      %s146 = sphi 0, %s148
      %s149 = sphi 0, %s146
      %s150 = sphi 0, %s149
      %s166 = sphi 0, %s150
    $region4: #{tpu_custom_call.1} parent=1 // loop_header_branch
      %17 = sbr.rel (%p15) target = $region8
    $region5: #{tpu_custom_call.1} parent=1 // loop_body
      %s19 = ssub.s32 %s14, 1
      %s20 = ssub.s32 %s14, 2
      %s27 = sadd.s32 1, %s22
      %p28 = scmp.ge.s32.totalorder %s27, 1
      %s29 = scalar_select %p28, 0, %s27
      %s30 = sadd.s32 1, %s21
      %s31 = scalar_select %p28, %s30, %s21
      %p32 = scmp.ge.s32.totalorder %s31, 2
      %s33 = scalar_select %p32, 0, %s31
      %s34 = ssub.s32 %s22, %s29
      %p35 = scmp.eq.s32.totalorder %s34, 0
      %s37 = sadd.s32 %s36, 1
      %s38 = scalar_select %p35, %s36, %s37
      %p41 = pneg %p35
      %p42 = scmp.eq.s32.totalorder %s14, 1
      %p43 = por %p41, %p42
      %p44 = scmp.ne.s32.totalorder %s36, %s39
      %p45 = scmp.eq.s32.totalorder %s14, 0
      %p46 = por %p44, %p45
      %p47 = scmp.ne.s32.totalorder %s36, %s39
      %p48 = scmp.eq.s32.totalorder %s19, 1
      %p49 = por %p47, %p48
      %p50 = scmp.ne.s32.totalorder %s39, %s40
      %p51 = scmp.eq.s32.totalorder %s19, 0
      %p52 = por %p50, %p51
      %p53 = scmp.ne.s32.totalorder %s39, %s40
      %p54 = scmp.eq.s32.totalorder %s20, 1
      %p55 = por %p53, %p54
      %p57 = scmp.ne.s32.totalorder %s40, %s56
      %p58 = scmp.eq.s32.totalorder %s20, 0
      %p59 = por %p57, %p58
      %s61 = sadd.s32 %s60, 1
      %p64 = scmp.eq.s32.totalorder %s14, 1
      %p65 = scmp.ne.s32.totalorder %s60, %s62
      %p66 = scmp.eq.s32.totalorder %s14, 0
      %p67 = por %p65, %p66
      %p68 = scmp.ne.s32.totalorder %s60, %s62
      %p69 = scmp.eq.s32.totalorder %s19, 1
      %p70 = por %p68, %p69
      %p71 = scmp.ne.s32.totalorder %s62, %s63
      %p72 = scmp.eq.s32.totalorder %s19, 0
      %p73 = por %p71, %p72
      %p74 = scmp.ne.s32.totalorder %s62, %s63
      %p75 = scmp.eq.s32.totalorder %s20, 1
      %p76 = por %p74, %p75
      %p78 = scmp.ne.s32.totalorder %s63, %s77
      %p79 = scmp.eq.s32.totalorder %s20, 0
      %p80 = por %p78, %p79
      %s82 = sadd.s32 %s81, 1
      %p85 = scmp.eq.s32.totalorder %s14, 1
      %p86 = scmp.ne.s32.totalorder %s81, %s83
      %p87 = scmp.eq.s32.totalorder %s14, 0
      %p88 = por %p86, %p87
      %p89 = scmp.ne.s32.totalorder %s81, %s83
      %p90 = scmp.eq.s32.totalorder %s19, 1
      %p91 = por %p89, %p90
      %p92 = scmp.ne.s32.totalorder %s83, %s84
      %p93 = scmp.eq.s32.totalorder %s19, 0
      %p94 = por %p92, %p93
      %p95 = scmp.ne.s32.totalorder %s83, %s84
      %p96 = scmp.eq.s32.totalorder %s20, 1
      %p97 = por %p95, %p96
      %p99 = scmp.ne.s32.totalorder %s84, %s98
      %p100 = scmp.eq.s32.totalorder %s20, 0
      %p101 = por %p99, %p100
      %s103 = sadd.s32 %s102, 1
      %p106 = scmp.eq.s32.totalorder %s14, 1
      %p107 = scmp.ne.s32.totalorder %s102, %s104
      %p108 = scmp.eq.s32.totalorder %s14, 0
      %p109 = por %p107, %p108
      %p110 = scmp.ne.s32.totalorder %s102, %s104
      %p111 = scmp.eq.s32.totalorder %s19, 1
      %p112 = por %p110, %p111
      %p113 = scmp.ne.s32.totalorder %s104, %s105
      %p114 = scmp.eq.s32.totalorder %s19, 0
      %p115 = por %p113, %p114
      %p116 = scmp.ne.s32.totalorder %s104, %s105
      %p117 = scmp.eq.s32.totalorder %s20, 1
      %p118 = por %p116, %p117
      %p120 = scmp.ne.s32.totalorder %s105, %s119
      %p121 = scmp.eq.s32.totalorder %s20, 0
      %p122 = por %p120, %p121
      %s124 = sadd.s32 %s123, 1
      %p127 = scmp.eq.s32.totalorder %s14, 1
      %p128 = scmp.ne.s32.totalorder %s123, %s125
      %p129 = scmp.eq.s32.totalorder %s14, 0
      %p130 = por %p128, %p129
      %p131 = scmp.ne.s32.totalorder %s123, %s125
      %p132 = scmp.eq.s32.totalorder %s19, 1
      %p133 = por %p131, %p132
      %p134 = scmp.ne.s32.totalorder %s125, %s126
      %p135 = scmp.eq.s32.totalorder %s19, 0
      %p136 = por %p134, %p135
      %p137 = scmp.ne.s32.totalorder %s125, %s126
      %p138 = scmp.eq.s32.totalorder %s20, 1
      %p139 = por %p137, %p138
      %p141 = scmp.ne.s32.totalorder %s126, %s140
      %p142 = scmp.eq.s32.totalorder %s20, 0
      %p143 = por %p141, %p142
      %s144 = ssub.s32 %s22, %s29
      %p145 = scmp.eq.s32.totalorder %s144, 0
      %s147 = sadd.s32 %s146, 1
      %s148 = scalar_select %p145, %s146, %s147
      %p151 = pneg %p145
      %p152 = scmp.eq.s32.totalorder %s14, 1
      %p153 = por %p151, %p152
      %p154 = scmp.ne.s32.totalorder %s146, %s149
      %p155 = scmp.eq.s32.totalorder %s14, 0
      %p156 = por %p154, %p155
      %p157 = scmp.ne.s32.totalorder %s146, %s149
      %p158 = scmp.eq.s32.totalorder %s19, 1
      %p159 = por %p157, %p158
      %p160 = scmp.ne.s32.totalorder %s149, %s150
      %p161 = scmp.eq.s32.totalorder %s19, 0
      %p162 = por %p160, %p161
      %p163 = scmp.ne.s32.totalorder %s149, %s150
      %p164 = scmp.eq.s32.totalorder %s20, 1
      %p165 = por %p163, %p164
      %p167 = scmp.ne.s32.totalorder %s150, %s166
      %p168 = scmp.eq.s32.totalorder %s20, 0
      %p169 = por %p167, %p168
      %p170 = scmp.le.s32.totalorder 1, %s14
      %p171 = scmp.lt.s32.totalorder %s14, 3
      %p172 = pnand %p170, %p171
      %p173 = pneg %p172
      // Predicated region
      $region9: #{tpu_custom_call.1} parent=5 // pred_check
        _
      $region10: #{tpu_custom_call.1} parent=5 // pred_check_branch
        %175 = sbr.rel (%p172) target = $region12
      $region11: #{tpu_custom_call.1} parent=5 // pred_region
        %s176 = ssub.s32 %s14, 1
        // Predicated region
        $region13: #{tpu_custom_call.1} parent=11 // pred_check
          %p177 = pneg %p52
        $region14: #{tpu_custom_call.1} parent=11 // pred_check_branch
          %179 = sbr.rel (%p177) target = $region16
        $region15: #{tpu_custom_call.1} parent=11 // pred_region
          %s181 = ssub.s32 512, 512
          %182 = vsyncadd [#allocation5], %s181
          %s183 = smul.addr %s24, 8
          %s184 = smul.addr %s183, 64
          %s185 = scalar_lea.hbm %s0, %s184
          %s187 = sshll.u32 [#allocation4], 4
          %s188 = int_to_ptr.vmem [resolvable:$true] %s187
          %190 = dma.hbm_to_vmem [thread:$0]  %s185, 512, %s188, [#allocation5]
        $region16: #{tpu_custom_call.1} parent=11 // pred_fallthru
          _
        // Predicated region
        $region17: #{tpu_custom_call.1} parent=11 // pred_check
          %p191 = pneg %p73
        $region18: #{tpu_custom_call.1} parent=11 // pred_check_branch
          %193 = sbr.rel (%p191) target = $region20
        $region19: #{tpu_custom_call.1} parent=11 // pred_region
          %s195 = ssub.s32 8192, 8192
          %196 = vsyncadd [#allocation8], %s195
          %s197 = sshll.u32 [#allocation7], 4
          %s198 = int_to_ptr.vmem [resolvable:$true] %s197
          %203 = dma.hbm_to_vmem [thread:$0]  %s1, 8192, %s198, [#allocation8], 64, 64, 4
        $region20: #{tpu_custom_call.1} parent=11 // pred_fallthru
          _
        // Predicated region
        $region21: #{tpu_custom_call.1} parent=11 // pred_check
          %p204 = pneg %p94
        $region22: #{tpu_custom_call.1} parent=11 // pred_check_branch
          %206 = sbr.rel (%p204) target = $region24
        $region23: #{tpu_custom_call.1} parent=11 // pred_region
          _
        $region24: #{tpu_custom_call.1} parent=11 // pred_fallthru
          _
        // Predicated region
        $region25: #{tpu_custom_call.1} parent=11 // pred_check
          %p207 = pneg %p115
        $region26: #{tpu_custom_call.1} parent=11 // pred_check_branch
          %209 = sbr.rel (%p207) target = $region28
        $region27: #{tpu_custom_call.1} parent=11 // pred_region
          %s211 = ssub.s32 2048, 2048
          %212 = vsyncadd [#allocation8], %s211
          %s213 = sshll.u32 [#allocation9], 4
          %s214 = int_to_ptr.vmem [resolvable:$true] %s213
          %219 = dma.hbm_to_vmem [thread:$0]  %s3, 2048, %s214, [#allocation8], 128, 128, 8
        $region28: #{tpu_custom_call.1} parent=11 // pred_fallthru
          _
        // Predicated region
        $region29: #{tpu_custom_call.1} parent=11 // pred_check
          %p220 = pneg %p136
        $region30: #{tpu_custom_call.1} parent=11 // pred_check_branch
          %222 = sbr.rel (%p220) target = $region32
        $region31: #{tpu_custom_call.1} parent=11 // pred_region
          _
        $region32: #{tpu_custom_call.1} parent=11 // pred_fallthru
          _
      $region12: #{tpu_custom_call.1} parent=5 // pred_fallthru
        _
      %p223 = scmp.lt.s32.totalorder %s14, 2
      // Predicated region
      $region33: #{tpu_custom_call.1} parent=5 // pred_check
        %p224 = pneg %p223
      $region34: #{tpu_custom_call.1} parent=5 // pred_check_branch
        %226 = sbr.rel (%p224) target = $region36
      $region35: #{tpu_custom_call.1} parent=5 // pred_region
        _
      $region36: #{tpu_custom_call.1} parent=5 // pred_fallthru
        _
      %p227 = scmp.le.s32.totalorder 1, %s14
      %p228 = scmp.lt.s32.totalorder %s14, 3
      %p229 = pnand %p227, %p228
      %p230 = pneg %p229
      // Predicated region
      $region37: #{tpu_custom_call.1} parent=5 // pred_check
        _
      $region38: #{tpu_custom_call.1} parent=5 // pred_check_branch
        %232 = sbr.rel (%p229) target = $region40
      $region39: #{tpu_custom_call.1} parent=5 // pred_region
        %s233 = ssub.s32 %s14, 1
        // Predicated region
        $region41: #{tpu_custom_call.1} parent=39 // pred_check
          %p234 = pneg %p52
        $region42: #{tpu_custom_call.1} parent=39 // pred_check_branch
          %236 = sbr.rel (%p234) target = $region44
        $region43: #{tpu_custom_call.1} parent=39 // pred_region
          %237 = dma.done [#allocation5], 512
        $region44: #{tpu_custom_call.1} parent=39 // pred_fallthru
          _
        // Predicated region
        $region45: #{tpu_custom_call.1} parent=39 // pred_check
          %p238 = pneg %p73
        $region46: #{tpu_custom_call.1} parent=39 // pred_check_branch
          %240 = sbr.rel (%p238) target = $region48
        $region47: #{tpu_custom_call.1} parent=39 // pred_region
          %241 = dma.done [#allocation8], 8192
        $region48: #{tpu_custom_call.1} parent=39 // pred_fallthru
          _
        // Predicated region
        $region49: #{tpu_custom_call.1} parent=39 // pred_check
          %p242 = pneg %p115
        $region50: #{tpu_custom_call.1} parent=39 // pred_check_branch
          %244 = sbr.rel (%p242) target = $region52
        $region51: #{tpu_custom_call.1} parent=39 // pred_region
          %245 = dma.done [#allocation8], 2048
        $region52: #{tpu_custom_call.1} parent=39 // pred_fallthru
          _
        %p246 = pneg %p52
        %p247 = pneg %p49
        %p248 = pneg %p73
        %p249 = pneg %p70
        %p250 = pneg %p94
        %p251 = pneg %p91
        %p252 = pneg %p115
        %p253 = pneg %p112
        %p254 = pneg %p136
        %p255 = pneg %p133
        %p256 = pneg %p162
        %p257 = pneg %p159
        %p259 = scmp.eq.s32.totalorder %s23, 0
        %p260 = scmp.eq.s32.totalorder %s24, 0
        %p261 = pnand %p259, %p260
        %p262 = pneg %p261
        // Predicated region
        $region53: #{tpu_custom_call.1} parent=39 // pred_check
          _
        $region54: #{tpu_custom_call.1} parent=39 // pred_check_branch
          %264 = sbr.rel (%p261) target = $region56
        $region55: #{tpu_custom_call.1} parent=39 // pred_region
          %265 = vst [vmem:[#allocation2] sm:$0x1] -inf
          %266 = vst [vmem:[#allocation3] sm:$0x1] 0.0
        $region56: #{tpu_custom_call.1} parent=39 // pred_fallthru
          _
        %v267 = vld [vmem:[#allocation4] sm:$0xff]
        %v268 = vld [vmem:[#allocation4 + $0x8] sm:$0xff]
        %v269 = vld [vmem:[#allocation4 + $0x10] sm:$0xff]
        %v270 = vld [vmem:[#allocation4 + $0x18] sm:$0xff]
        %v271 = vld [vmem:[#allocation7] sm:$0xf]
        %v272 = vld [vmem:[#allocation7 + $0x4] sm:$0xf]
        %v273 = vld [vmem:[#allocation7 + $0x8] sm:$0xf]
        %v274 = vld [vmem:[#allocation7 + $0xc] sm:$0xf]
        %v275 = vld [vmem:[#allocation7 + $0x10] sm:$0xf]
        %v276 = vld [vmem:[#allocation7 + $0x14] sm:$0xf]
        %v277 = vld [vmem:[#allocation7 + $0x18] sm:$0xf]
        %v278 = vld [vmem:[#allocation7 + $0x1c] sm:$0xf]
        %v279 = vld [vmem:[#allocation7 + $0x20] sm:$0xf]
        %v280 = vld [vmem:[#allocation7 + $0x24] sm:$0xf]
        %v281 = vld [vmem:[#allocation7 + $0x28] sm:$0xf]
        %v282 = vld [vmem:[#allocation7 + $0x2c] sm:$0xf]
        %v283 = vld [vmem:[#allocation7 + $0x30] sm:$0xf]
        %v284 = vld [vmem:[#allocation7 + $0x34] sm:$0xf]
        %v285 = vld [vmem:[#allocation7 + $0x38] sm:$0xf]
        %v286 = vld [vmem:[#allocation7 + $0x3c] sm:$0xf]
        %v287 = vld [vmem:[#allocation7 + $0x40] sm:$0xf]
        %v288 = vld [vmem:[#allocation7 + $0x44] sm:$0xf]
        %v289 = vld [vmem:[#allocation7 + $0x48] sm:$0xf]
        %v290 = vld [vmem:[#allocation7 + $0x4c] sm:$0xf]
        %v291 = vld [vmem:[#allocation7 + $0x50] sm:$0xf]
        %v292 = vld [vmem:[#allocation7 + $0x54] sm:$0xf]
        %v293 = vld [vmem:[#allocation7 + $0x58] sm:$0xf]
        %v294 = vld [vmem:[#allocation7 + $0x5c] sm:$0xf]
        %v295 = vld [vmem:[#allocation7 + $0x60] sm:$0xf]
        %v296 = vld [vmem:[#allocation7 + $0x64] sm:$0xf]
        %v297 = vld [vmem:[#allocation7 + $0x68] sm:$0xf]
        %v298 = vld [vmem:[#allocation7 + $0x6c] sm:$0xf]
        %v299 = vld [vmem:[#allocation7 + $0x70] sm:$0xf]
        %v300 = vld [vmem:[#allocation7 + $0x74] sm:$0xf]
        %v301 = vld [vmem:[#allocation7 + $0x78] sm:$0xf]
        %v302 = vld [vmem:[#allocation7 + $0x7c] sm:$0xf]
        %v303 = vld [vmem:[#allocation7 + $0x80] sm:$0xf]
        %v304 = vld [vmem:[#allocation7 + $0x84] sm:$0xf]
        %v305 = vld [vmem:[#allocation7 + $0x88] sm:$0xf]
        %v306 = vld [vmem:[#allocation7 + $0x8c] sm:$0xf]
        %v307 = vld [vmem:[#allocation7 + $0x90] sm:$0xf]
        %v308 = vld [vmem:[#allocation7 + $0x94] sm:$0xf]
        %v309 = vld [vmem:[#allocation7 + $0x98] sm:$0xf]
        %v310 = vld [vmem:[#allocation7 + $0x9c] sm:$0xf]
        %v311 = vld [vmem:[#allocation7 + $0xa0] sm:$0xf]
        %v312 = vld [vmem:[#allocation7 + $0xa4] sm:$0xf]
        %v313 = vld [vmem:[#allocation7 + $0xa8] sm:$0xf]
        %v314 = vld [vmem:[#allocation7 + $0xac] sm:$0xf]
        %v315 = vld [vmem:[#allocation7 + $0xb0] sm:$0xf]
        %v316 = vld [vmem:[#allocation7 + $0xb4] sm:$0xf]
        %v317 = vld [vmem:[#allocation7 + $0xb8] sm:$0xf]
        %v318 = vld [vmem:[#allocation7 + $0xbc] sm:$0xf]
        %v319 = vld [vmem:[#allocation7 + $0xc0] sm:$0xf]
        %v320 = vld [vmem:[#allocation7 + $0xc4] sm:$0xf]
        %v321 = vld [vmem:[#allocation7 + $0xc8] sm:$0xf]
        %v322 = vld [vmem:[#allocation7 + $0xcc] sm:$0xf]
        %v323 = vld [vmem:[#allocation7 + $0xd0] sm:$0xf]
        %v324 = vld [vmem:[#allocation7 + $0xd4] sm:$0xf]
        %v325 = vld [vmem:[#allocation7 + $0xd8] sm:$0xf]
        %v326 = vld [vmem:[#allocation7 + $0xdc] sm:$0xf]
        %v327 = vld [vmem:[#allocation7 + $0xe0] sm:$0xf]
        %v328 = vld [vmem:[#allocation7 + $0xe4] sm:$0xf]
        %v329 = vld [vmem:[#allocation7 + $0xe8] sm:$0xf]
        %v330 = vld [vmem:[#allocation7 + $0xec] sm:$0xf]
        %v331 = vld [vmem:[#allocation7 + $0xf0] sm:$0xf]
        %v332 = vld [vmem:[#allocation7 + $0xf4] sm:$0xf]
        %v333 = vld [vmem:[#allocation7 + $0xf8] sm:$0xf]
        %v334 = vld [vmem:[#allocation7 + $0xfc] sm:$0xf]
        %v335 = vld [vmem:[#allocation7 + $0x100] sm:$0xf]
        %v336 = vld [vmem:[#allocation7 + $0x104] sm:$0xf]
        %v337 = vld [vmem:[#allocation7 + $0x108] sm:$0xf]
        %v338 = vld [vmem:[#allocation7 + $0x10c] sm:$0xf]
        %v339 = vld [vmem:[#allocation7 + $0x110] sm:$0xf]
        %v340 = vld [vmem:[#allocation7 + $0x114] sm:$0xf]
        %v341 = vld [vmem:[#allocation7 + $0x118] sm:$0xf]
        %v342 = vld [vmem:[#allocation7 + $0x11c] sm:$0xf]
        %v343 = vld [vmem:[#allocation7 + $0x120] sm:$0xf]
        %v344 = vld [vmem:[#allocation7 + $0x124] sm:$0xf]
        %v345 = vld [vmem:[#allocation7 + $0x128] sm:$0xf]
        %v346 = vld [vmem:[#allocation7 + $0x12c] sm:$0xf]
        %v347 = vld [vmem:[#allocation7 + $0x130] sm:$0xf]
        %v348 = vld [vmem:[#allocation7 + $0x134] sm:$0xf]
        %v349 = vld [vmem:[#allocation7 + $0x138] sm:$0xf]
        %v350 = vld [vmem:[#allocation7 + $0x13c] sm:$0xf]
        %v351 = vld [vmem:[#allocation7 + $0x140] sm:$0xf]
        %v352 = vld [vmem:[#allocation7 + $0x144] sm:$0xf]
        %v353 = vld [vmem:[#allocation7 + $0x148] sm:$0xf]
        %v354 = vld [vmem:[#allocation7 + $0x14c] sm:$0xf]
        %v355 = vld [vmem:[#allocation7 + $0x150] sm:$0xf]
        %v356 = vld [vmem:[#allocation7 + $0x154] sm:$0xf]
        %v357 = vld [vmem:[#allocation7 + $0x158] sm:$0xf]
        %v358 = vld [vmem:[#allocation7 + $0x15c] sm:$0xf]
        %v359 = vld [vmem:[#allocation7 + $0x160] sm:$0xf]
        %v360 = vld [vmem:[#allocation7 + $0x164] sm:$0xf]
        %v361 = vld [vmem:[#allocation7 + $0x168] sm:$0xf]
        %v362 = vld [vmem:[#allocation7 + $0x16c] sm:$0xf]
        %v363 = vld [vmem:[#allocation7 + $0x170] sm:$0xf]
        %v364 = vld [vmem:[#allocation7 + $0x174] sm:$0xf]
        %v365 = vld [vmem:[#allocation7 + $0x178] sm:$0xf]
        %v366 = vld [vmem:[#allocation7 + $0x17c] sm:$0xf]
        %v367 = vld [vmem:[#allocation7 + $0x180] sm:$0xf]
        %v368 = vld [vmem:[#allocation7 + $0x184] sm:$0xf]
        %v369 = vld [vmem:[#allocation7 + $0x188] sm:$0xf]
        %v370 = vld [vmem:[#allocation7 + $0x18c] sm:$0xf]
        %v371 = vld [vmem:[#allocation7 + $0x190] sm:$0xf]
        %v372 = vld [vmem:[#allocation7 + $0x194] sm:$0xf]
        %v373 = vld [vmem:[#allocation7 + $0x198] sm:$0xf]
        %v374 = vld [vmem:[#allocation7 + $0x19c] sm:$0xf]
        %v375 = vld [vmem:[#allocation7 + $0x1a0] sm:$0xf]
        %v376 = vld [vmem:[#allocation7 + $0x1a4] sm:$0xf]
        %v377 = vld [vmem:[#allocation7 + $0x1a8] sm:$0xf]
        %v378 = vld [vmem:[#allocation7 + $0x1ac] sm:$0xf]
        %v379 = vld [vmem:[#allocation7 + $0x1b0] sm:$0xf]
        %v380 = vld [vmem:[#allocation7 + $0x1b4] sm:$0xf]
        %v381 = vld [vmem:[#allocation7 + $0x1b8] sm:$0xf]
        %v382 = vld [vmem:[#allocation7 + $0x1bc] sm:$0xf]
        %v383 = vld [vmem:[#allocation7 + $0x1c0] sm:$0xf]
        %v384 = vld [vmem:[#allocation7 + $0x1c4] sm:$0xf]
        %v385 = vld [vmem:[#allocation7 + $0x1c8] sm:$0xf]
        %v386 = vld [vmem:[#allocation7 + $0x1cc] sm:$0xf]
        %v387 = vld [vmem:[#allocation7 + $0x1d0] sm:$0xf]
        %v388 = vld [vmem:[#allocation7 + $0x1d4] sm:$0xf]
        %v389 = vld [vmem:[#allocation7 + $0x1d8] sm:$0xf]
        %v390 = vld [vmem:[#allocation7 + $0x1dc] sm:$0xf]
        %v391 = vld [vmem:[#allocation7 + $0x1e0] sm:$0xf]
        %v392 = vld [vmem:[#allocation7 + $0x1e4] sm:$0xf]
        %v393 = vld [vmem:[#allocation7 + $0x1e8] sm:$0xf]
        %v394 = vld [vmem:[#allocation7 + $0x1ec] sm:$0xf]
        %v395 = vld [vmem:[#allocation7 + $0x1f0] sm:$0xf]
        %v396 = vld [vmem:[#allocation7 + $0x1f4] sm:$0xf]
        %v397 = vld [vmem:[#allocation7 + $0x1f8] sm:$0xf]
        %v398 = vld [vmem:[#allocation7 + $0x1fc] sm:$0xf]
        %v399 = vld [vmem:[%s2] sm:$0x1]
        %v401 = vlaneseq
        %v402 = vshrl.u32 %v401, 7
        %v403 = vsub.s32 0, %v402
        %v404 = vrot.slane %v399, %v403
        %v410 = vunpack.c.l.b16 %v267
        %v411 = vunpack.c.h.b16 %v267
        %v412 = vunpack.c.l.b16 %v268
        %v413 = vunpack.c.h.b16 %v268
        %v414 = vunpack.c.l.b16 %v269
        %v415 = vunpack.c.h.b16 %v269
        %v416 = vunpack.c.l.b16 %v270
        %v417 = vunpack.c.h.b16 %v270
        %v418 = vpack.c.b16 %v410, %v410
        %v419 = vpack.c.b16 %v411, %v411
        %v420 = vpack.c.b16 %v412, %v412
        %v421 = vpack.c.b16 %v413, %v413
        %v422 = vpack.c.b16 %v414, %v414
        %v423 = vpack.c.b16 %v415, %v415
        %v424 = vpack.c.b16 %v416, %v416
        %v425 = vpack.c.b16 %v417, %v417
        %v562 = vunpack.c.l.b16 %v271
        %v563 = vunpack.c.l.b16 %v272
        %v564 = vunpack.c.l.b16 %v273
        %v565 = vunpack.c.l.b16 %v274
        %v566 = vunpack.c.l.b16 %v275
        %v567 = vunpack.c.l.b16 %v276
        %v568 = vunpack.c.l.b16 %v277
        %v569 = vunpack.c.l.b16 %v278
        %v570 = vunpack.c.l.b16 %v279
        %v571 = vunpack.c.l.b16 %v280
        %v572 = vunpack.c.l.b16 %v281
        %v573 = vunpack.c.l.b16 %v282
        %v574 = vunpack.c.l.b16 %v283
        %v575 = vunpack.c.l.b16 %v284
        %v576 = vunpack.c.l.b16 %v285
        %v577 = vunpack.c.l.b16 %v286
        %v578 = vunpack.c.l.b16 %v287
        %v579 = vunpack.c.l.b16 %v288
        %v580 = vunpack.c.l.b16 %v289
        %v581 = vunpack.c.l.b16 %v290
        %v582 = vunpack.c.l.b16 %v291
        %v583 = vunpack.c.l.b16 %v292
        %v584 = vunpack.c.l.b16 %v293
        %v585 = vunpack.c.l.b16 %v294
        %v586 = vunpack.c.l.b16 %v295
        %v587 = vunpack.c.l.b16 %v296
        %v588 = vunpack.c.l.b16 %v297
        %v589 = vunpack.c.l.b16 %v298
        %v590 = vunpack.c.l.b16 %v299
        %v591 = vunpack.c.l.b16 %v300
        %v592 = vunpack.c.l.b16 %v301
        %v593 = vunpack.c.l.b16 %v302
        %v594 = vunpack.c.l.b16 %v303
        %v595 = vunpack.c.l.b16 %v304
        %v596 = vunpack.c.l.b16 %v305
        %v597 = vunpack.c.l.b16 %v306
        %v598 = vunpack.c.l.b16 %v307
        %v599 = vunpack.c.l.b16 %v308
        %v600 = vunpack.c.l.b16 %v309
        %v601 = vunpack.c.l.b16 %v310
        %v602 = vunpack.c.l.b16 %v311
        %v603 = vunpack.c.l.b16 %v312
        %v604 = vunpack.c.l.b16 %v313
        %v605 = vunpack.c.l.b16 %v314
        %v606 = vunpack.c.l.b16 %v315
        %v607 = vunpack.c.l.b16 %v316
        %v608 = vunpack.c.l.b16 %v317
        %v609 = vunpack.c.l.b16 %v318
        %v610 = vunpack.c.l.b16 %v319
        %v611 = vunpack.c.l.b16 %v320
        %v612 = vunpack.c.l.b16 %v321
        %v613 = vunpack.c.l.b16 %v322
        %v614 = vunpack.c.l.b16 %v323
        %v615 = vunpack.c.l.b16 %v324
        %v616 = vunpack.c.l.b16 %v325
        %v617 = vunpack.c.l.b16 %v326
        %v618 = vunpack.c.l.b16 %v327
        %v619 = vunpack.c.l.b16 %v328
        %v620 = vunpack.c.l.b16 %v329
        %v621 = vunpack.c.l.b16 %v330
        %v622 = vunpack.c.l.b16 %v331
        %v623 = vunpack.c.l.b16 %v332
        %v624 = vunpack.c.l.b16 %v333
        %v625 = vunpack.c.l.b16 %v334
        %v626 = vunpack.c.l.b16 %v335
        %v627 = vunpack.c.l.b16 %v336
        %v628 = vunpack.c.l.b16 %v337
        %v629 = vunpack.c.l.b16 %v338
        %v630 = vunpack.c.l.b16 %v339
        %v631 = vunpack.c.l.b16 %v340
        %v632 = vunpack.c.l.b16 %v341
        %v633 = vunpack.c.l.b16 %v342
        %v634 = vunpack.c.l.b16 %v343
        %v635 = vunpack.c.l.b16 %v344
        %v636 = vunpack.c.l.b16 %v345
        %v637 = vunpack.c.l.b16 %v346
        %v638 = vunpack.c.l.b16 %v347
        %v639 = vunpack.c.l.b16 %v348
        %v640 = vunpack.c.l.b16 %v349
        %v641 = vunpack.c.l.b16 %v350
        %v642 = vunpack.c.l.b16 %v351
        %v643 = vunpack.c.l.b16 %v352
        %v644 = vunpack.c.l.b16 %v353
        %v645 = vunpack.c.l.b16 %v354
        %v646 = vunpack.c.l.b16 %v355
        %v647 = vunpack.c.l.b16 %v356
        %v648 = vunpack.c.l.b16 %v357
        %v649 = vunpack.c.l.b16 %v358
        %v650 = vunpack.c.l.b16 %v359
        %v651 = vunpack.c.l.b16 %v360
        %v652 = vunpack.c.l.b16 %v361
        %v653 = vunpack.c.l.b16 %v362
        %v654 = vunpack.c.l.b16 %v363
        %v655 = vunpack.c.l.b16 %v364
        %v656 = vunpack.c.l.b16 %v365
        %v657 = vunpack.c.l.b16 %v366
        %v658 = vunpack.c.l.b16 %v367
        %v659 = vunpack.c.l.b16 %v368
        %v660 = vunpack.c.l.b16 %v369
        %v661 = vunpack.c.l.b16 %v370
        %v662 = vunpack.c.l.b16 %v371
        %v663 = vunpack.c.l.b16 %v372
        %v664 = vunpack.c.l.b16 %v373
        %v665 = vunpack.c.l.b16 %v374
        %v666 = vunpack.c.l.b16 %v375
        %v667 = vunpack.c.l.b16 %v376
        %v668 = vunpack.c.l.b16 %v377
        %v669 = vunpack.c.l.b16 %v378
        %v670 = vunpack.c.l.b16 %v379
        %v671 = vunpack.c.l.b16 %v380
        %v672 = vunpack.c.l.b16 %v381
        %v673 = vunpack.c.l.b16 %v382
        %v674 = vunpack.c.l.b16 %v383
        %v675 = vunpack.c.l.b16 %v384
        %v676 = vunpack.c.l.b16 %v385
        %v677 = vunpack.c.l.b16 %v386
        %v678 = vunpack.c.l.b16 %v387
        %v679 = vunpack.c.l.b16 %v388
        %v680 = vunpack.c.l.b16 %v389
        %v681 = vunpack.c.l.b16 %v390
        %v682 = vunpack.c.l.b16 %v391
        %v683 = vunpack.c.l.b16 %v392
        %v684 = vunpack.c.l.b16 %v393
        %v685 = vunpack.c.l.b16 %v394
        %v686 = vunpack.c.l.b16 %v395
        %v687 = vunpack.c.l.b16 %v396
        %v688 = vunpack.c.l.b16 %v397
        %v689 = vunpack.c.l.b16 %v398
        %v690 = vpack.c.b16 %v563, %v562
        %v691 = vpack.c.b16 %v565, %v564
        %v692 = vpack.c.b16 %v567, %v566
        %v693 = vpack.c.b16 %v569, %v568
        %v694 = vpack.c.b16 %v571, %v570
        %v695 = vpack.c.b16 %v573, %v572
        %v696 = vpack.c.b16 %v575, %v574
        %v697 = vpack.c.b16 %v577, %v576
        %v698 = vpack.c.b16 %v579, %v578
        %v699 = vpack.c.b16 %v581, %v580
        %v700 = vpack.c.b16 %v583, %v582
        %v701 = vpack.c.b16 %v585, %v584
        %v702 = vpack.c.b16 %v587, %v586
        %v703 = vpack.c.b16 %v589, %v588
        %v704 = vpack.c.b16 %v591, %v590
        %v705 = vpack.c.b16 %v593, %v592
        %v706 = vpack.c.b16 %v595, %v594
        %v707 = vpack.c.b16 %v597, %v596
        %v708 = vpack.c.b16 %v599, %v598
        %v709 = vpack.c.b16 %v601, %v600
        %v710 = vpack.c.b16 %v603, %v602
        %v711 = vpack.c.b16 %v605, %v604
        %v712 = vpack.c.b16 %v607, %v606
        %v713 = vpack.c.b16 %v609, %v608
        %v714 = vpack.c.b16 %v611, %v610
        %v715 = vpack.c.b16 %v613, %v612
        %v716 = vpack.c.b16 %v615, %v614
        %v717 = vpack.c.b16 %v617, %v616
        %v718 = vpack.c.b16 %v619, %v618
        %v719 = vpack.c.b16 %v621, %v620
        %v720 = vpack.c.b16 %v623, %v622
        %v721 = vpack.c.b16 %v625, %v624
        %v722 = vpack.c.b16 %v627, %v626
        %v723 = vpack.c.b16 %v629, %v628
        %v724 = vpack.c.b16 %v631, %v630
        %v725 = vpack.c.b16 %v633, %v632
        %v726 = vpack.c.b16 %v635, %v634
        %v727 = vpack.c.b16 %v637, %v636
        %v728 = vpack.c.b16 %v639, %v638
        %v729 = vpack.c.b16 %v641, %v640
        %v730 = vpack.c.b16 %v643, %v642
        %v731 = vpack.c.b16 %v645, %v644
        %v732 = vpack.c.b16 %v647, %v646
        %v733 = vpack.c.b16 %v649, %v648
        %v734 = vpack.c.b16 %v651, %v650
        %v735 = vpack.c.b16 %v653, %v652
        %v736 = vpack.c.b16 %v655, %v654
        %v737 = vpack.c.b16 %v657, %v656
        %v738 = vpack.c.b16 %v659, %v658
        %v739 = vpack.c.b16 %v661, %v660
        %v740 = vpack.c.b16 %v663, %v662
        %v741 = vpack.c.b16 %v665, %v664
        %v742 = vpack.c.b16 %v667, %v666
        %v743 = vpack.c.b16 %v669, %v668
        %v744 = vpack.c.b16 %v671, %v670
        %v745 = vpack.c.b16 %v673, %v672
        %v746 = vpack.c.b16 %v675, %v674
        %v747 = vpack.c.b16 %v677, %v676
        %v748 = vpack.c.b16 %v679, %v678
        %v749 = vpack.c.b16 %v681, %v680
        %v750 = vpack.c.b16 %v683, %v682
        %v751 = vpack.c.b16 %v685, %v684
        %v752 = vpack.c.b16 %v687, %v686
        %v753 = vpack.c.b16 %v689, %v688
        %818 = vmatprep.subr.bf16.mxu0 0
        %819 = vmatpush1.bf16.msra.mxu0 %v690
        %820 = vmatprep.subr.bf16.mxu0 0
        %821 = vmatpush1.bf16.msra.mxu0 %v691
        %822 = vmatprep.subr.bf16.mxu0 0
        %823 = vmatpush1.bf16.msra.mxu0 %v692
        %824 = vmatprep.subr.bf16.mxu0 0
        %825 = vmatpush1.bf16.msra.mxu0 %v693
        %826 = vmatprep.subr.bf16.mxu0 0
        %827 = vmatpush1.bf16.msra.mxu0 %v694
        %828 = vmatprep.subr.bf16.mxu0 0
        %829 = vmatpush1.bf16.msra.mxu0 %v695
        %830 = vmatprep.subr.bf16.mxu0 0
        %831 = vmatpush1.bf16.msra.mxu0 %v696
        %832 = vmatprep.subr.bf16.mxu0 0
        %833 = vmatpush1.bf16.msra.mxu0 %v697
        %834 = vmatprep.subr.bf16.mxu0 0
        %835 = vmatpush1.bf16.msra.mxu0 %v698
        %836 = vmatprep.subr.bf16.mxu0 0
        %837 = vmatpush1.bf16.msra.mxu0 %v699
        %838 = vmatprep.subr.bf16.mxu0 0
        %839 = vmatpush1.bf16.msra.mxu0 %v700
        %840 = vmatprep.subr.bf16.mxu0 0
        %841 = vmatpush1.bf16.msra.mxu0 %v701
        %842 = vmatprep.subr.bf16.mxu0 0
        %843 = vmatpush1.bf16.msra.mxu0 %v702
        %844 = vmatprep.subr.bf16.mxu0 0
        %845 = vmatpush1.bf16.msra.mxu0 %v703
        %846 = vmatprep.subr.bf16.mxu0 0
        %847 = vmatpush1.bf16.msra.mxu0 %v704
        %848 = vmatprep.subr.bf16.mxu0 0
        %849 = vmatpush1.bf16.msra.mxu0 %v705
        %850 = vmatprep.mubr.bf16.mxu0 %v419
        %851 = vmatmul.mubr.bf16.gmra.mrb[0].mxu0 %v418
        %v852 = vpop.f32.mrb[0].mxu0
        %v853 = vadd.f32 %v404, %v852
        %v854 = vpop.f32.mrb[0].mxu0
        %v855 = vpop.f32.mrb[0].mxu0
        %v856 = vpop.f32.mrb[0].mxu0
        %857 = vdwg.mxu0
        %858 = vmatprep.subr.bf16.mxu0 0
        %859 = vmatpush1.bf16.msra.mxu0 %v706
        %860 = vmatprep.subr.bf16.mxu0 0
        %861 = vmatpush1.bf16.msra.mxu0 %v707
        %862 = vmatprep.subr.bf16.mxu0 0
        %863 = vmatpush1.bf16.msra.mxu0 %v708
        %864 = vmatprep.subr.bf16.mxu0 0
        %865 = vmatpush1.bf16.msra.mxu0 %v709
        %866 = vmatprep.subr.bf16.mxu0 0
        %867 = vmatpush1.bf16.msra.mxu0 %v710
        %868 = vmatprep.subr.bf16.mxu0 0
        %869 = vmatpush1.bf16.msra.mxu0 %v711
        %870 = vmatprep.subr.bf16.mxu0 0
        %871 = vmatpush1.bf16.msra.mxu0 %v712
        %872 = vmatprep.subr.bf16.mxu0 0
        %873 = vmatpush1.bf16.msra.mxu0 %v713
        %874 = vmatprep.subr.bf16.mxu0 0
        %875 = vmatpush1.bf16.msra.mxu0 %v714
        %876 = vmatprep.subr.bf16.mxu0 0
        %877 = vmatpush1.bf16.msra.mxu0 %v715
        %878 = vmatprep.subr.bf16.mxu0 0
        %879 = vmatpush1.bf16.msra.mxu0 %v716
        %880 = vmatprep.subr.bf16.mxu0 0
        %881 = vmatpush1.bf16.msra.mxu0 %v717
        %882 = vmatprep.subr.bf16.mxu0 0
        %883 = vmatpush1.bf16.msra.mxu0 %v718
        %884 = vmatprep.subr.bf16.mxu0 0
        %885 = vmatpush1.bf16.msra.mxu0 %v719
        %886 = vmatprep.subr.bf16.mxu0 0
        %887 = vmatpush1.bf16.msra.mxu0 %v720
        %888 = vmatprep.subr.bf16.mxu0 0
        %889 = vmatpush1.bf16.msra.mxu0 %v721
        %890 = vmatprep.mubr.bf16.mxu0 %v421
        %891 = vmatmul.mubr.bf16.gmra.mrb[0].mxu0 %v420
        %v892 = vpop.f32.mrb[0].mxu0
        %v893 = vadd.f32 %v853, %v892
        %v894 = vpop.f32.mrb[0].mxu0
        %v895 = vpop.f32.mrb[0].mxu0
        %v896 = vpop.f32.mrb[0].mxu0
        %897 = vdwg.mxu0
        %898 = vmatprep.subr.bf16.mxu0 0
        %899 = vmatpush1.bf16.msra.mxu0 %v722
        %900 = vmatprep.subr.bf16.mxu0 0
        %901 = vmatpush1.bf16.msra.mxu0 %v723
        %902 = vmatprep.subr.bf16.mxu0 0
        %903 = vmatpush1.bf16.msra.mxu0 %v724
        %904 = vmatprep.subr.bf16.mxu0 0
        %905 = vmatpush1.bf16.msra.mxu0 %v725
        %906 = vmatprep.subr.bf16.mxu0 0
        %907 = vmatpush1.bf16.msra.mxu0 %v726
        %908 = vmatprep.subr.bf16.mxu0 0
        %909 = vmatpush1.bf16.msra.mxu0 %v727
        %910 = vmatprep.subr.bf16.mxu0 0
        %911 = vmatpush1.bf16.msra.mxu0 %v728
        %912 = vmatprep.subr.bf16.mxu0 0
        %913 = vmatpush1.bf16.msra.mxu0 %v729
        %914 = vmatprep.subr.bf16.mxu0 0
        %915 = vmatpush1.bf16.msra.mxu0 %v730
        %916 = vmatprep.subr.bf16.mxu0 0
        %917 = vmatpush1.bf16.msra.mxu0 %v731
        %918 = vmatprep.subr.bf16.mxu0 0
        %919 = vmatpush1.bf16.msra.mxu0 %v732
        %920 = vmatprep.subr.bf16.mxu0 0
        %921 = vmatpush1.bf16.msra.mxu0 %v733
        %922 = vmatprep.subr.bf16.mxu0 0
        %923 = vmatpush1.bf16.msra.mxu0 %v734
        %924 = vmatprep.subr.bf16.mxu0 0
        %925 = vmatpush1.bf16.msra.mxu0 %v735
        %926 = vmatprep.subr.bf16.mxu0 0
        %927 = vmatpush1.bf16.msra.mxu0 %v736
        %928 = vmatprep.subr.bf16.mxu0 0
        %929 = vmatpush1.bf16.msra.mxu0 %v737
        %930 = vmatprep.mubr.bf16.mxu0 %v423
        %931 = vmatmul.mubr.bf16.gmra.mrb[0].mxu0 %v422
        %v932 = vpop.f32.mrb[0].mxu0
        %v933 = vadd.f32 %v893, %v932
        %v934 = vpop.f32.mrb[0].mxu0
        %v935 = vpop.f32.mrb[0].mxu0
        %v936 = vpop.f32.mrb[0].mxu0
        %937 = vdwg.mxu0
        %938 = vmatprep.subr.bf16.mxu0 0
        %939 = vmatpush1.bf16.msra.mxu0 %v738
        %940 = vmatprep.subr.bf16.mxu0 0
        %941 = vmatpush1.bf16.msra.mxu0 %v739
        %942 = vmatprep.subr.bf16.mxu0 0
        %943 = vmatpush1.bf16.msra.mxu0 %v740
        %944 = vmatprep.subr.bf16.mxu0 0
        %945 = vmatpush1.bf16.msra.mxu0 %v741
        %946 = vmatprep.subr.bf16.mxu0 0
        %947 = vmatpush1.bf16.msra.mxu0 %v742
        %948 = vmatprep.subr.bf16.mxu0 0
        %949 = vmatpush1.bf16.msra.mxu0 %v743
        %950 = vmatprep.subr.bf16.mxu0 0
        %951 = vmatpush1.bf16.msra.mxu0 %v744
        %952 = vmatprep.subr.bf16.mxu0 0
        %953 = vmatpush1.bf16.msra.mxu0 %v745
        %954 = vmatprep.subr.bf16.mxu0 0
        %955 = vmatpush1.bf16.msra.mxu0 %v746
        %956 = vmatprep.subr.bf16.mxu0 0
        %957 = vmatpush1.bf16.msra.mxu0 %v747
        %958 = vmatprep.subr.bf16.mxu0 0
        %959 = vmatpush1.bf16.msra.mxu0 %v748
        %960 = vmatprep.subr.bf16.mxu0 0
        %961 = vmatpush1.bf16.msra.mxu0 %v749
        %962 = vmatprep.subr.bf16.mxu0 0
        %963 = vmatpush1.bf16.msra.mxu0 %v750
        %964 = vmatprep.subr.bf16.mxu0 0
        %965 = vmatpush1.bf16.msra.mxu0 %v751
        %966 = vmatprep.subr.bf16.mxu0 0
        %967 = vmatpush1.bf16.msra.mxu0 %v752
        %968 = vmatprep.subr.bf16.mxu0 0
        %969 = vmatpush1.bf16.msra.mxu0 %v753
        %970 = vmatprep.mubr.bf16.mxu0 %v425
        %971 = vmatmul.mubr.bf16.gmra.mrb[0].mxu0 %v424
        %v972 = vpop.f32.mrb[0].mxu0
        %v973 = vadd.f32 %v933, %v972
        %v974 = vpop.f32.mrb[0].mxu0
        %v975 = vpop.f32.mrb[0].mxu0
        %v976 = vpop.f32.mrb[0].mxu0
        %977 = vdwg.mxu0
        %v978 = vmax.f32 %v973, 0.0
        %v979 = vld [vmem:[#allocation9] sm:$0xff]
        %v980 = vld [vmem:[#allocation9 + $0x8] sm:$0xff]
        %v981 = vld [vmem:[#allocation9 + $0x10] sm:$0xff]
        %v982 = vld [vmem:[#allocation9 + $0x18] sm:$0xff]
        %v983 = vld [vmem:[#allocation9 + $0x20] sm:$0xff]
        %v984 = vld [vmem:[#allocation9 + $0x28] sm:$0xff]
        %v985 = vld [vmem:[#allocation9 + $0x30] sm:$0xff]
        %v986 = vld [vmem:[#allocation9 + $0x38] sm:$0xff]
        %v987 = vld [vmem:[#allocation9 + $0x40] sm:$0xff]
        %v988 = vld [vmem:[#allocation9 + $0x48] sm:$0xff]
        %v989 = vld [vmem:[#allocation9 + $0x50] sm:$0xff]
        %v990 = vld [vmem:[#allocation9 + $0x58] sm:$0xff]
        %v991 = vld [vmem:[#allocation9 + $0x60] sm:$0xff]
        %v992 = vld [vmem:[#allocation9 + $0x68] sm:$0xff]
        %v993 = vld [vmem:[#allocation9 + $0x70] sm:$0xff]
        %v994 = vld [vmem:[#allocation9 + $0x78] sm:$0xff]
        %v995 = vld [vmem:[%s4] sm:$0x1]
        %v997 = vlaneseq
        %v998 = vshrl.u32 %v997, 7
        %v999 = vsub.s32 0, %v998
        %v1000 = vrot.slane %v995, %v999
        %1002 = vmatprep.subr.mxu0 0.0
        %1003 = vmatpush1.msra.mxu0 %v979
        %1004 = vmatprep.subr.mxu0 0.0
        %1005 = vmatpush1.msra.mxu0 %v980
        %1006 = vmatprep.subr.mxu0 0.0
        %1007 = vmatpush1.msra.mxu0 %v981
        %1008 = vmatprep.subr.mxu0 0.0
        %1009 = vmatpush1.msra.mxu0 %v982
        %1010 = vmatprep.subr.mxu0 0.0
        %1011 = vmatpush1.msra.mxu0 %v983
        %1012 = vmatprep.subr.mxu0 0.0
        %1013 = vmatpush1.msra.mxu0 %v984
        %1014 = vmatprep.subr.mxu0 0.0
        %1015 = vmatpush1.msra.mxu0 %v985
        %1016 = vmatprep.subr.mxu0 0.0
        %1017 = vmatpush1.msra.mxu0 %v986
        %1018 = vmatprep.subr.mxu0 0.0
        %1019 = vmatpush1.msra.mxu0 %v987
        %1020 = vmatprep.subr.mxu0 0.0
        %1021 = vmatpush1.msra.mxu0 %v988
        %1022 = vmatprep.subr.mxu0 0.0
        %1023 = vmatpush1.msra.mxu0 %v989
        %1024 = vmatprep.subr.mxu0 0.0
        %1025 = vmatpush1.msra.mxu0 %v990
        %1026 = vmatprep.subr.mxu0 0.0
        %1027 = vmatpush1.msra.mxu0 %v991
        %1028 = vmatprep.subr.mxu0 0.0
        %1029 = vmatpush1.msra.mxu0 %v992
        %1030 = vmatprep.subr.mxu0 0.0
        %1031 = vmatpush1.msra.mxu0 %v993
        %1032 = vmatprep.subr.mxu0 0.0
        %1033 = vmatpush1.msra.mxu0 %v994
        %1034 = vmatprep.subr.mxu0 0.0
        %1035 = vmatpush1.msra.mxu0 0.0
        %1036 = vmatprep.subr.mxu0 0.0
        %1037 = vmatpush1.msra.mxu0 0.0
        %1038 = vmatprep.subr.mxu0 0.0
        %1039 = vmatpush1.msra.mxu0 0.0
        %1040 = vmatprep.subr.mxu0 0.0
        %1041 = vmatpush1.msra.mxu0 0.0
        %1042 = vmatprep.subr.mxu0 0.0
        %1043 = vmatpush1.msra.mxu0 0.0
        %1044 = vmatprep.subr.mxu0 0.0
        %1045 = vmatpush1.msra.mxu0 0.0
        %1046 = vmatprep.subr.mxu0 0.0
        %1047 = vmatpush1.msra.mxu0 0.0
        %1048 = vmatprep.subr.mxu0 0.0
        %1049 = vmatpush1.msra.mxu0 0.0
        %1050 = vmatprep.subr.mxu0 0.0
        %1051 = vmatpush1.msra.mxu0 0.0
        %1052 = vmatprep.subr.mxu0 0.0
        %1053 = vmatpush1.msra.mxu0 0.0
        %1054 = vmatprep.subr.mxu0 0.0
        %1055 = vmatpush1.msra.mxu0 0.0
        %1056 = vmatprep.subr.mxu0 0.0
        %1057 = vmatpush1.msra.mxu0 0.0
        %1058 = vmatprep.subr.mxu0 0.0
        %1059 = vmatpush1.msra.mxu0 0.0
        %1060 = vmatprep.subr.mxu0 0.0
        %1061 = vmatpush1.msra.mxu0 0.0
        %1062 = vmatprep.subr.mxu0 0.0
        %1063 = vmatpush1.msra.mxu0 0.0
        %1064 = vmatprep.subr.mxu0 0.0
        %1065 = vmatpush1.msra.mxu0 0.0
        %1066 = vmatprep.mubr.f32.mxu0 0.0
        %1067 = vmatmul.mubr.f32.gmra.mrb[0].mxu0 %v978
        %v1068 = vpop.f32.mrb[0].mxu0
        %v1069 = vadd.f32 %v1000, %v1068
        %v1070 = vpop.f32.mrb[0].mxu0
        %1071 = vdwg.mxu0
        %v1072 = vlaneseq
        %v1073 = vshrl.u32 %v1072, 7
        %s1074 = smul.u32 %s24, 8
        %v1075 = vstv %s1074
        %v1076 = vadd.s32 %v1073, %v1075
        %vm1077 = vcmp.lt.s32.totalorder %v1076, 2
        // Predicated region
        $region57: #{tpu_custom_call.1} parent=39 // pred_check
          %p1078 = pneg %p259
        $region58: #{tpu_custom_call.1} parent=39 // pred_check_branch
          %1080 = sbr.rel (%p1078) target = $region60
        $region59: #{tpu_custom_call.1} parent=39 // pred_region
          %v1081 = vsel %vm1077, %v1069, -inf
          %v1082 = vrot.slane %v1081, 4
          %v1083 = vmax.f32 %v1081, %v1082
          %v1084 = vrot.slane %v1083, 2
          %v1085 = vmax.f32 %v1083, %v1084
          %v1086 = vrot.slane %v1085, 1
          %v1087 = vmax.f32 %v1085, %v1086
          %v1088 = vld [vmem:[#allocation2] sm:$0x1]
          %v1089 = vmax.f32 %v1088, %v1087
          %v1090 = vld [vmem:[#allocation3] sm:$0x1]
          %v1091 = vsub.f32 %v1088, %v1089
          %v1092 = vmul.f32 %v1091, 1.442695
          %v1093 = vpow.pop %v1092
          %v1094 = vmul.f32 %v1090, %v1093
          %v1096 = vlaneseq
          %v1097 = vshrl.u32 %v1096, 7
          %v1098 = vsub.s32 0, %v1097
          %v1099 = vrot.slane %v1089, %v1098
          %v1101 = vsub.f32 %v1069, %v1099
          %v1102 = vmul.f32 %v1101, 1.442695
          %v1103 = vpow.pop %v1102
          %v1104 = vsel %vm1077, %v1103, 0.0
          %v1105 = vrot.slane %v1104, 4
          %v1106 = vadd.f32 %v1104, %v1105
          %v1107 = vrot.slane %v1106, 2
          %v1108 = vadd.f32 %v1106, %v1107
          %v1109 = vrot.slane %v1108, 1
          %v1110 = vadd.f32 %v1108, %v1109
          %v1111 = vadd.f32 %v1094, %v1110
          %1112 = vst [vmem:[#allocation3] sm:$0x1] %v1111
          %1113 = vst [vmem:[#allocation2] sm:$0x1] %v1089
          %1114 = vst [vmem:[#allocation10] sm:$0xff] %v1069
        $region60: #{tpu_custom_call.1} parent=39 // pred_fallthru
          _
        %p1115 = scmp.eq.s32.totalorder %s23, 1
        // Predicated region
        $region61: #{tpu_custom_call.1} parent=39 // pred_check
          %p1116 = pneg %p1115
        $region62: #{tpu_custom_call.1} parent=39 // pred_check_branch
          %1118 = sbr.rel (%p1116) target = $region64
        $region63: #{tpu_custom_call.1} parent=39 // pred_region
          %v1119 = vld [vmem:[#allocation2] sm:$0x1]
          %v1120 = vld [vmem:[#allocation3] sm:$0x1]
          %v1121 = vlog2.pop %v1120
          %v1122 = vmul.f32 %v1121, 0.6931472
          %v1123 = vadd.f32 %v1119, %v1122
          %v1125 = vlaneseq
          %v1126 = vshrl.u32 %v1125, 7
          %v1127 = vsub.s32 0, %v1126
          %v1128 = vrot.slane %v1123, %v1127
          %v1130 = vsub.f32 %v1069, %v1128
          %1131 = vst [vmem:[#allocation10] sm:$0xff] %v1130
        $region64: #{tpu_custom_call.1} parent=39 // pred_fallthru
          _
        // Predicated region
        $region65: #{tpu_custom_call.1} parent=39 // pred_check
          %p1132 = pneg %p159
        $region66: #{tpu_custom_call.1} parent=39 // pred_check_branch
          %1134 = sbr.rel (%p1132) target = $region68
        $region67: #{tpu_custom_call.1} parent=39 // pred_region
          %s1136 = ssub.s32 128, 128
          %1137 = vsyncadd [#allocation6], %s1136
          %s1138 = smul.addr %s24, 128
          %s1139 = scalar_lea.hbm %s5, %s1138
          %s1141 = sshll.u32 [#allocation10], 4
          %s1142 = int_to_ptr.vmem [resolvable:$true] %s1141
          %1144 = dma.vmem_to_hbm [thread:$0]  %s1142, 128, %s1139, [#allocation6]
        $region68: #{tpu_custom_call.1} parent=39 // pred_fallthru
          _
        // Predicated region
        $region69: #{tpu_custom_call.1} parent=39 // pred_check
          %p1145 = pneg %p159
        $region70: #{tpu_custom_call.1} parent=39 // pred_check_branch
          %1147 = sbr.rel (%p1145) target = $region72
        $region71: #{tpu_custom_call.1} parent=39 // pred_region
          %1148 = dma.done [#allocation6], 128
        $region72: #{tpu_custom_call.1} parent=39 // pred_fallthru
          _
      $region40: #{tpu_custom_call.1} parent=5 // pred_fallthru
        _
      %p1149 = scmp.le.s32.totalorder 2, %s14
      // Predicated region
      $region73: #{tpu_custom_call.1} parent=5 // pred_check
        %p1150 = pneg %p1149
      $region74: #{tpu_custom_call.1} parent=5 // pred_check_branch
        %1152 = sbr.rel (%p1150) target = $region76
      $region75: #{tpu_custom_call.1} parent=5 // pred_region
        %s1153 = ssub.s32 %s14, 2
      $region76: #{tpu_custom_call.1} parent=5 // pred_fallthru
        _
    $region6: #{tpu_custom_call.1} parent=1 // loop_footer
      %s18 = sadd.s32 1, %s14
    $region7: #{tpu_custom_call.1} parent=1 // loop_footer_branch
      %13 = sbr.rel target = $region3
    $region8: #{tpu_custom_call.1} parent=1 // loop_exit
      _
    %1154 = vsyncpa [#allocation5], 1
    %s1155 = scalar_lea.sflag [#allocation5], 1
    %1156 = vsyncpa %s1155, 1
    %1157 = vsyncpa [#allocation8], 1
    %1158 = vsyncpa [#allocation6], 1
    %s1159 = scalar_lea.sflag [#allocation6], 1
    %1160 = vsyncpa %s1159, 1

</llo_original>
